<compile_context>
chip_gen: v7x
topology: tpu7x:2x2x1
jax: 0.10.0
libtpu: 0.0.40
codegen_flags: <defaults>
</compile_context>

<pallas_src>
import functools

import jax
import jax.numpy as jnp
from jax import lax
from jax.experimental import pallas as pl
from jax.experimental.pallas import tpu as pltpu


def _round_up(v, m):
    return -(-v // m) * m


# -----------------------------------------------------------------------------
# Pallas kernel: whole residual block for NB images, channel-major, pixels on lanes.
# -----------------------------------------------------------------------------
def residual_block_kernel(x_ref, w1_ref, b1_ref, w2_ref, b2_ref, m_ref, o_ref,
                          *, H, W, P):
    # x_ref : (Cin_p, L)               L = NB*H*W pixels on the lane axis (row-major)
    # w1_ref: (Cmid_p, 9*Cin_p)  bf16  conv1 weights (BN1 scale folded in)
    # b1_ref: (Cmid_p, 1)        f32   BN1 shift
    # w2_ref: (Cout_p, 9*Cmid_p+Cin_p) bf16  conv2 weights (BN2 scale folded) ++ 1x1 skip
    # b2_ref: (Cout_p, 1)        f32   BN2 shift
    # m_ref : (4, L)             f32   {row!=0, row!=H-1, col!=0, col!=W-1} masks
    # o_ref : (Cout_p, L)        f32
    HW = H * W
    L = x_ref.shape[1]

    x = x_ref[...]                                        # (Cin_p, L) f32

    # tap-bleed masks (shared by both convs); corner taps need row * column masks.
    mrow = (m_ref[0:1, :], None, m_ref[1:2, :])           # indexed by dy
    mcol = (m_ref[2:3, :], None, m_ref[3:4, :])           # indexed by dx
    tap_mask = []
    for dy in range(3):
        for dx in range(3):
            mm = None
            if mrow[dy] is not None and mcol[dx] is not None:
                mm = mrow[dy] * mcol[dx]
            elif mrow[dy] is not None:
                mm = mrow[dy]
            elif mcol[dx] is not None:
                mm = mcol[dx]
            tap_mask.append(mm)

    def im2col(a):
        # Halo built in-register: aligned 128-lane zero concat, then every tap (dy,dx)
        # is a static lane-offset slice.  Bleed across row / image boundaries (the
        # images are packed back to back on the lane axis) is removed by tap_mask.
        zpad = jnp.zeros((a.shape[0], P), jnp.float32)
        apad = jnp.concatenate([zpad, a, zpad], axis=1)   # (C, L + 2P)
        taps = []
        for k in range(9):
            dy, dx = divmod(k, 3)
            off = (dy - 1) * W + (dx - 1)
            t = apad[:, P + off:P + off + L]
            if tap_mask[k] is not None:
                t = t * tap_mask[k]
            taps.append(t)
        return taps

    # ---- conv1 (BN1 scale folded): single (Cmid_p, 9*Cin_p) @ (9*Cin_p, L) MXU matmul ----
    patches1 = jnp.concatenate(im2col(x), axis=0).astype(jnp.bfloat16)
    acc1 = jnp.dot(w1_ref[...], patches1, preferred_element_type=jnp.float32)
    y1 = jnp.maximum(acc1 + b1_ref[...], 0.0)             # BN1 shift + ReLU, (Cmid_p, L)

    # ---- conv2 (BN2 scale folded) fused with the 1x1 skip conv:
    #      skip weights are the last Cin_p columns of w2, its "patches" are x itself ----
    patches2 = jnp.concatenate(im2col(y1) + [x], axis=0).astype(jnp.bfloat16)
    acc2 = jnp.dot(w2_ref[...], patches2, preferred_element_type=jnp.float32)

    # ---- BN2 shift + residual (already inside acc2) + ReLU; lane-dense store ----
    o_ref[...] = jnp.maximum(acc2 + b2_ref[...], 0.0).astype(o_ref.dtype)


# -----------------------------------------------------------------------------
# Wrapper: NCHW in / NCHW out.
# -----------------------------------------------------------------------------
def residual_block_pallas(x_nchw, params, *, images_per_step=None):
    N, Cin, H, W = x_nchw.shape
    HW = H * W
    P = _round_up(W + 1, 128)            # halo width in the flat layout, lane-aligned

    w1m, w2m, b1, b2 = params["w1m"], params["w2m"], params["b1"], params["b2"]
    Cmid_p, K1 = w1m.shape
    Cout_p, K2 = w2m.shape
    Cin_p = K1 // 9
    Cout = params["out_channels"]

    # images per grid step: wide lane blocks for the single-TC chips (v5e/v6e), but keep
    # >= 2 steps when possible so the "parallel" batch axis can use both v7x TensorCores.
    if images_per_step is None:
        nb_max = 8
        if N >= 2 * nb_max:
            nb = nb_max
        elif N >= 2:
            nb = (N + 1) // 2
        else:
            nb = 1
    else:
        nb = max(1, min(images_per_step, N))
    steps = -(-N // nb)
    Np = steps * nb
    L = nb * HW

    x = x_nchw.astype(jnp.float32)
    if Cin_p != Cin:
        x = jnp.pad(x, ((0, 0), (0, Cin_p - Cin), (0, 0), (0, 0)))
    if Np != N:
        x = jnp.pad(x, ((0, Np - N), (0, 0), (0, 0), (0, 0)))
    # channel-major global layout: all pixels (of all images) on the lane axis
    x_cm = jnp.transpose(x, (1, 0, 2, 3)).reshape(Cin_p, Np * HW)

    # {0,1} masks killing conv-tap bleed across row / image boundaries (per lane-block)
    idx = jnp.arange(L, dtype=jnp.int32)
    row = (idx % HW) // W
    col = idx % W
    masks = jnp.stack([row != 0, row != H - 1,
                       col != 0, col != W - 1]).astype(jnp.float32)   # (4, L)

    kernel = functools.partial(residual_block_kernel, H=H, W=W, P=P)
    grid_spec = pltpu.PrefetchScalarGridSpec(
        num_scalar_prefetch=0,
        grid=(steps,),
        in_specs=[
            pl.BlockSpec((Cin_p, L), lambda g: (0, g)),     # x: one lane-block per step
            pl.BlockSpec((Cmid_p, K1), lambda g: (0, 0)),   # weights / shifts / masks stay
            pl.BlockSpec((Cmid_p, 1), lambda g: (0, 0)),    #   VMEM-resident (constant map)
            pl.BlockSpec((Cout_p, K2), lambda g: (0, 0)),
            pl.BlockSpec((Cout_p, 1), lambda g: (0, 0)),
            pl.BlockSpec((4, L), lambda g: (0, 0)),
        ],
        out_specs=pl.BlockSpec((Cout_p, L), lambda g: (0, g)),
    )
    out = pl.pallas_call(
        kernel,
        out_shape=jax.ShapeDtypeStruct((Cout_p, Np * HW), jnp.float32),
        grid_spec=grid_spec,
        compiler_params=pltpu.CompilerParams(
            dimension_semantics=("parallel",)),             # batch axis -> both TCs on v7x
    )(x_cm, w1m, b1, w2m, b2, masks)

    out = out[:Cout].reshape(Cout, Np, H, W)[:, :N]
    return jnp.transpose(out, (1, 0, 2, 3))


# -----------------------------------------------------------------------------
# Parameter construction (PyTorch layouts) + repacking for the kernel.
# -----------------------------------------------------------------------------
def _fold_bn(gamma, beta, mean, var, eps=1e-5):
    scale = gamma / jnp.sqrt(var + eps)
    shift = beta - mean * scale
    return scale, shift


def make_params(in_ch, out_ch, key):
    mid_ch = out_ch   # ResidualBlock default: mid_channels = out_channels
    ks = jax.random.split(key, 11)
    w1 = 0.1 * jax.random.normal(ks[0], (mid_ch, in_ch, 3, 3), jnp.float32)   # OIHW
    w2 = 0.1 * jax.random.normal(ks[1], (out_ch, mid_ch, 3, 3), jnp.float32)  # OIHW
    wsk = 0.1 * jax.random.normal(ks[2], (out_ch, in_ch), jnp.float32)        # 1x1 skip (O, I)
    g1 = 1.0 + 0.1 * jax.random.normal(ks[3], (mid_ch,), jnp.float32)
    be1 = 0.1 * jax.random.normal(ks[4], (mid_ch,), jnp.float32)
    m1 = 0.1 * jax.random.normal(ks[5], (mid_ch,), jnp.float32)
    v1 = jax.random.uniform(ks[6], (mid_ch,), jnp.float32, 0.5, 1.5)
    g2 = 1.0 + 0.1 * jax.random.normal(ks[7], (out_ch,), jnp.float32)
    be2 = 0.1 * jax.random.normal(ks[8], (out_ch,), jnp.float32)
    m2 = 0.1 * jax.random.normal(ks[9], (out_ch,), jnp.float32)
    v2 = jax.random.uniform(ks[10], (out_ch,), jnp.float32, 0.5, 1.5)
    # TODO(synk): training-mode BatchNorm (per-batch statistics) is not implemented;
    # eval-mode semantics (running stats folded into scale/shift) are used instead.
    return dict(w1=w1, w2=w2, wsk=wsk, bn1=(g1, be1, m1, v1), bn2=(g2, be2, m2, v2))


def pack_kernel_params(raw):
    """Fold BN scales into the conv weights and build the fused im2col matrices."""
    w1, w2, wsk = raw["w1"], raw["w2"], raw["wsk"]
    Cmid, Cin = w1.shape[0], w1.shape[1]
    Cout = w2.shape[0]
    Cin_p = _round_up(Cin, 8)
    Cmid_p = _round_up(Cmid, 8)
    Cout_p = _round_up(Cout, 8)

    s1, b1 = _fold_bn(*raw["bn1"])
    s2, b2 = _fold_bn(*raw["bn2"])

    # conv1: w1m[co, (dy*3+dx)*Cin_p + ci] = s1[co] * w1[co, ci, dy, dx]
    w1t = jnp.zeros((Cmid_p, 3, 3, Cin_p), jnp.float32)
    w1t = w1t.at[:Cmid, :, :, :Cin].set(jnp.transpose(w1, (0, 2, 3, 1)))
    s1p = jnp.zeros((Cmid_p,), jnp.float32).at[:Cmid].set(s1)
    w1m = (w1t * s1p[:, None, None, None]).reshape(Cmid_p, 9 * Cin_p)

    # conv2 (BN2 scale folded) ++ fused 1x1 skip (skip columns are NOT BN2-scaled)
    w2t = jnp.zeros((Cout_p, 3, 3, Cmid_p), jnp.float32)
    w2t = w2t.at[:Cout, :, :, :Cmid].set(jnp.transpose(w2, (0, 2, 3, 1)))
    s2p = jnp.zeros((Cout_p,), jnp.float32).at[:Cout].set(s2)
    w2conv = (w2t * s2p[:, None, None, None]).reshape(Cout_p, 9 * Cmid_p)
    if wsk is None:                      # in_channels == out_channels -> Identity skip
        wsk = jnp.eye(Cout, dtype=jnp.float32)
    wskp = jnp.zeros((Cout_p, Cin_p), jnp.float32).at[:Cout, :wsk.shape[1]].set(wsk)
    w2m = jnp.concatenate([w2conv, wskp], axis=1)        # (Cout_p, 9*Cmid_p + Cin_p)

    b1p = jnp.zeros((Cmid_p,), jnp.float32).at[:Cmid].set(b1).reshape(Cmid_p, 1)
    b2p = jnp.zeros((Cout_p,), jnp.float32).at[:Cout].set(b2).reshape(Cout_p, 1)
    return dict(w1m=w1m.astype(jnp.bfloat16), w2m=w2m.astype(jnp.bfloat16),
                b1=b1p, b2=b2p, out_channels=Cout)


# -----------------------------------------------------------------------------
# Pure-JAX reference (for correctness check).
# -----------------------------------------------------------------------------
def residual_block_ref(x_nchw, raw):
    dn = ("NCHW", "OIHW", "NCHW")
    s1, b1 = _fold_bn(*raw["bn1"])
    s2, b2 = _fold_bn(*raw["bn2"])
    y = lax.conv_general_dilated(x_nchw, raw["w1"], (1, 1), "SAME",
                                 dimension_numbers=dn)
    y = jnp.maximum(y * s1[None, :, None, None] + b1[None, :, None, None], 0.0)
    y = lax.conv_general_dilated(y, raw["w2"], (1, 1), "SAME",
                                 dimension_numbers=dn)
    y = y * s2[None, :, None, None] + b2[None, :, None, None]
    identity = jnp.einsum("oc,nchw->nohw", raw["wsk"], x_nchw)
    return jnp.maximum(y + identity, 0.0)


if __name__ == "__main__":
    key = jax.random.PRNGKey(0)
    k_p, k_x = jax.random.split(key)

    in_channels, out_channels = 8, 4     # in != out -> 1x1 skip conv path exercised
    N, H, W = 2, 16, 16
    x = jax.random.normal(k_x, (N, in_channels, H, W), jnp.float32)

    raw = make_params(in_channels, out_channels, k_p)
    kparams = pack_kernel_params(raw)

    fwd = jax.jit(functools.partial(residual_block_pallas, params=kparams))
    out = jax.block_until_ready(fwd(x))

    ref = jax.block_until_ready(residual_block_ref(x, raw))
    assert out.shape == (N, out_channels, H, W), out.shape
    # bf16 MXU operands (f32 accumulation) -> slightly looser tolerance than pure f32
    assert jnp.allclose(out, ref, atol=2e-2, rtol=2e-2), \
        float(jnp.max(jnp.abs(out - ref)))
    print("KERNEL_OK")
</pallas_src>

<mosaic_0001>
module attributes {stable_mosaic.version = 11 : i64} {
  func.func @residual_block_kernel(%arg0: i32, %arg1: memref<8x256xf32, #tpu.memory_space<vmem>>, %arg2: memref<8x72xbf16, #tpu.memory_space<vmem>>, %arg3: memref<8x1xf32, #tpu.memory_space<vmem>>, %arg4: memref<8x80xbf16, #tpu.memory_space<vmem>>, %arg5: memref<8x1xf32, #tpu.memory_space<vmem>>, %arg6: memref<4x256xf32, #tpu.memory_space<vmem>>, %arg7: memref<8x256xf32, #tpu.memory_space<vmem>>) attributes {dimension_semantics = [#tpu.dimension_semantics<parallel>], iteration_bounds = array<i64: 2>, scalar_prefetch = 0 : i64, scratch_operands = 0 : i64, tpu.core_type = #tpu.core_type<tc>, window_params = [{transform_indices = @transform_0, window_bounds = array<i64: 8, 256>}, {pipeline_mode = #tpu.pipeline_mode<synchronous>, transform_indices = @transform_1, window_bounds = array<i64: 8, 72>}, {pipeline_mode = #tpu.pipeline_mode<synchronous>, transform_indices = @transform_2, window_bounds = array<i64: 8, 1>}, {pipeline_mode = #tpu.pipeline_mode<synchronous>, transform_indices = @transform_3, window_bounds = array<i64: 8, 80>}, {pipeline_mode = #tpu.pipeline_mode<synchronous>, transform_indices = @transform_4, window_bounds = array<i64: 8, 1>}, {pipeline_mode = #tpu.pipeline_mode<synchronous>, transform_indices = @transform_5, window_bounds = array<i64: 4, 256>}, {transform_indices = @transform_6, window_bounds = array<i64: 8, 256>}]} {
    %c0 = arith.constant 0 : index
    %c0_0 = arith.constant 0 : index
    %0 = vector.load %arg1[%c0, %c0_0] : memref<8x256xf32, #tpu.memory_space<vmem>>, vector<8x256xf32>
    %c0_1 = arith.constant 0 : index
    %c0_2 = arith.constant 0 : index
    %1 = vector.load %arg6[%c0_1, %c0_2] : memref<4x256xf32, #tpu.memory_space<vmem>>, vector<1x256xf32>
    %c1 = arith.constant 1 : index
    %c0_3 = arith.constant 0 : index
    %2 = vector.load %arg6[%c1, %c0_3] : memref<4x256xf32, #tpu.memory_space<vmem>>, vector<1x256xf32>
    %c2 = arith.constant 2 : index
    %c0_4 = arith.constant 0 : index
    %3 = vector.load %arg6[%c2, %c0_4] : memref<4x256xf32, #tpu.memory_space<vmem>>, vector<1x256xf32>
    %c3 = arith.constant 3 : index
    %c0_5 = arith.constant 0 : index
    %4 = vector.load %arg6[%c3, %c0_5] : memref<4x256xf32, #tpu.memory_space<vmem>>, vector<1x256xf32>
    %5 = arith.mulf %1, %3 : vector<1x256xf32>
    %6 = arith.mulf %1, %4 : vector<1x256xf32>
    %7 = arith.mulf %2, %3 : vector<1x256xf32>
    %8 = arith.mulf %2, %4 : vector<1x256xf32>
    %cst = arith.constant 0.000000e+00 : f32
    %9 = vector.broadcast %cst : f32 to vector<8x128xf32>
    %10 = tpu.concatenate %9, %0, %9 in 1 : vector<8x128xf32>, vector<8x256xf32>, vector<8x128xf32> -> vector<8x512xf32>
    %11 = vector.extract_strided_slice %10 {offsets = [0, 111], sizes = [8, 256], strides = [1, 1]} : vector<8x512xf32> to vector<8x256xf32>
    %12 = vector.broadcast %5 : vector<1x256xf32> to vector<8x256xf32>
    %13 = arith.mulf %11, %12 : vector<8x256xf32>
    %14 = vector.extract_strided_slice %10 {offsets = [0, 112], sizes = [8, 256], strides = [1, 1]} : vector<8x512xf32> to vector<8x256xf32>
    %15 = vector.broadcast %1 : vector<1x256xf32> to vector<8x256xf32>
    %16 = arith.mulf %14, %15 : vector<8x256xf32>
    %17 = vector.extract_strided_slice %10 {offsets = [0, 113], sizes = [8, 256], strides = [1, 1]} : vector<8x512xf32> to vector<8x256xf32>
    %18 = vector.broadcast %6 : vector<1x256xf32> to vector<8x256xf32>
    %19 = arith.mulf %17, %18 : vector<8x256xf32>
    %20 = vector.extract_strided_slice %10 {offsets = [0, 127], sizes = [8, 256], strides = [1, 1]} : vector<8x512xf32> to vector<8x256xf32>
    %21 = vector.broadcast %3 : vector<1x256xf32> to vector<8x256xf32>
    %22 = arith.mulf %20, %21 : vector<8x256xf32>
    %23 = vector.extract_strided_slice %10 {offsets = [0, 128], sizes = [8, 256], strides = [1, 1]} : vector<8x512xf32> to vector<8x256xf32>
    %24 = vector.extract_strided_slice %10 {offsets = [0, 129], sizes = [8, 256], strides = [1, 1]} : vector<8x512xf32> to vector<8x256xf32>
    %25 = vector.broadcast %4 : vector<1x256xf32> to vector<8x256xf32>
    %26 = arith.mulf %24, %25 : vector<8x256xf32>
    %27 = vector.extract_strided_slice %10 {offsets = [0, 143], sizes = [8, 256], strides = [1, 1]} : vector<8x512xf32> to vector<8x256xf32>
    %28 = vector.broadcast %7 : vector<1x256xf32> to vector<8x256xf32>
    %29 = arith.mulf %27, %28 : vector<8x256xf32>
    %30 = vector.extract_strided_slice %10 {offsets = [0, 144], sizes = [8, 256], strides = [1, 1]} : vector<8x512xf32> to vector<8x256xf32>
    %31 = vector.broadcast %2 : vector<1x256xf32> to vector<8x256xf32>
    %32 = arith.mulf %30, %31 : vector<8x256xf32>
    %33 = vector.extract_strided_slice %10 {offsets = [0, 145], sizes = [8, 256], strides = [1, 1]} : vector<8x512xf32> to vector<8x256xf32>
    %34 = vector.broadcast %8 : vector<1x256xf32> to vector<8x256xf32>
    %35 = arith.mulf %33, %34 : vector<8x256xf32>
    %36 = tpu.concatenate %13, %16, %19, %22, %23, %26, %29, %32, %35 in 0 : vector<8x256xf32>, vector<8x256xf32>, vector<8x256xf32>, vector<8x256xf32>, vector<8x256xf32>, vector<8x256xf32>, vector<8x256xf32>, vector<8x256xf32>, vector<8x256xf32> -> vector<72x256xf32>
    %37 = arith.truncf %36 : vector<72x256xf32> to vector<72x256xbf16>
    %c0_6 = arith.constant 0 : index
    %c0_7 = arith.constant 0 : index
    %38 = vector.load %arg2[%c0_6, %c0_7] : memref<8x72xbf16, #tpu.memory_space<vmem>>, vector<8x72xbf16>
    %cst_8 = arith.constant dense<0.000000e+00> : vector<8x256xf32>
    %39 = tpu.matmul %38, %37, %cst_8 {dimension_numbers = #tpu.dot_dimension_numbers<[1], [0], [0], [1], [0, 0, 1, 1], [], []>} : vector<8x72xbf16>, vector<72x256xbf16>, vector<8x256xf32> -> vector<8x256xf32>
    %c0_9 = arith.constant 0 : index
    %c0_10 = arith.constant 0 : index
    %40 = vector.load %arg3[%c0_9, %c0_10] : memref<8x1xf32, #tpu.memory_space<vmem>>, vector<8x1xf32>
    %41 = vector.broadcast %40 : vector<8x1xf32> to vector<8x256xf32>
    %42 = arith.addf %39, %41 : vector<8x256xf32>
    %cst_11 = arith.constant 0.000000e+00 : f32
    %43 = vector.broadcast %cst_11 : f32 to vector<8x256xf32>
    %44 = arith.maximumf %42, %43 : vector<8x256xf32>
    %cst_12 = arith.constant 0.000000e+00 : f32
    %45 = vector.broadcast %cst_12 : f32 to vector<8x128xf32>
    %46 = tpu.concatenate %45, %44, %45 in 1 : vector<8x128xf32>, vector<8x256xf32>, vector<8x128xf32> -> vector<8x512xf32>
    %47 = vector.extract_strided_slice %46 {offsets = [0, 111], sizes = [8, 256], strides = [1, 1]} : vector<8x512xf32> to vector<8x256xf32>
    %48 = vector.broadcast %5 : vector<1x256xf32> to vector<8x256xf32>
    %49 = arith.mulf %47, %48 : vector<8x256xf32>
    %50 = vector.extract_strided_slice %46 {offsets = [0, 112], sizes = [8, 256], strides = [1, 1]} : vector<8x512xf32> to vector<8x256xf32>
    %51 = vector.broadcast %1 : vector<1x256xf32> to vector<8x256xf32>
    %52 = arith.mulf %50, %51 : vector<8x256xf32>
    %53 = vector.extract_strided_slice %46 {offsets = [0, 113], sizes = [8, 256], strides = [1, 1]} : vector<8x512xf32> to vector<8x256xf32>
    %54 = vector.broadcast %6 : vector<1x256xf32> to vector<8x256xf32>
    %55 = arith.mulf %53, %54 : vector<8x256xf32>
    %56 = vector.extract_strided_slice %46 {offsets = [0, 127], sizes = [8, 256], strides = [1, 1]} : vector<8x512xf32> to vector<8x256xf32>
    %57 = vector.broadcast %3 : vector<1x256xf32> to vector<8x256xf32>
    %58 = arith.mulf %56, %57 : vector<8x256xf32>
    %59 = vector.extract_strided_slice %46 {offsets = [0, 128], sizes = [8, 256], strides = [1, 1]} : vector<8x512xf32> to vector<8x256xf32>
    %60 = vector.extract_strided_slice %46 {offsets = [0, 129], sizes = [8, 256], strides = [1, 1]} : vector<8x512xf32> to vector<8x256xf32>
    %61 = vector.broadcast %4 : vector<1x256xf32> to vector<8x256xf32>
    %62 = arith.mulf %60, %61 : vector<8x256xf32>
    %63 = vector.extract_strided_slice %46 {offsets = [0, 143], sizes = [8, 256], strides = [1, 1]} : vector<8x512xf32> to vector<8x256xf32>
    %64 = vector.broadcast %7 : vector<1x256xf32> to vector<8x256xf32>
    %65 = arith.mulf %63, %64 : vector<8x256xf32>
    %66 = vector.extract_strided_slice %46 {offsets = [0, 144], sizes = [8, 256], strides = [1, 1]} : vector<8x512xf32> to vector<8x256xf32>
    %67 = vector.broadcast %2 : vector<1x256xf32> to vector<8x256xf32>
    %68 = arith.mulf %66, %67 : vector<8x256xf32>
    %69 = vector.extract_strided_slice %46 {offsets = [0, 145], sizes = [8, 256], strides = [1, 1]} : vector<8x512xf32> to vector<8x256xf32>
    %70 = vector.broadcast %8 : vector<1x256xf32> to vector<8x256xf32>
    %71 = arith.mulf %69, %70 : vector<8x256xf32>
    %72 = tpu.concatenate %49, %52, %55, %58, %59, %62, %65, %68, %71, %0 in 0 : vector<8x256xf32>, vector<8x256xf32>, vector<8x256xf32>, vector<8x256xf32>, vector<8x256xf32>, vector<8x256xf32>, vector<8x256xf32>, vector<8x256xf32>, vector<8x256xf32>, vector<8x256xf32> -> vector<80x256xf32>
    %73 = arith.truncf %72 : vector<80x256xf32> to vector<80x256xbf16>
    %c0_13 = arith.constant 0 : index
    %c0_14 = arith.constant 0 : index
    %74 = vector.load %arg4[%c0_13, %c0_14] : memref<8x80xbf16, #tpu.memory_space<vmem>>, vector<8x80xbf16>
    %cst_15 = arith.constant dense<0.000000e+00> : vector<8x256xf32>
    %75 = tpu.matmul %74, %73, %cst_15 {dimension_numbers = #tpu.dot_dimension_numbers<[1], [0], [0], [1], [0, 0, 1, 1], [], []>} : vector<8x80xbf16>, vector<80x256xbf16>, vector<8x256xf32> -> vector<8x256xf32>
    %c0_16 = arith.constant 0 : index
    %c0_17 = arith.constant 0 : index
    %76 = vector.load %arg5[%c0_16, %c0_17] : memref<8x1xf32, #tpu.memory_space<vmem>>, vector<8x1xf32>
    %77 = vector.broadcast %76 : vector<8x1xf32> to vector<8x256xf32>
    %78 = arith.addf %75, %77 : vector<8x256xf32>
    %cst_18 = arith.constant 0.000000e+00 : f32
    %79 = vector.broadcast %cst_18 : f32 to vector<8x256xf32>
    %80 = arith.maximumf %78, %79 : vector<8x256xf32>
    %c0_19 = arith.constant 0 : index
    %c0_20 = arith.constant 0 : index
    %81 = vector.load %arg7[%c0_19, %c0_20] : memref<8x256xf32, #tpu.memory_space<vmem>>, vector<8x256xf32>
    tpu.vector_store %arg7[%c0_19, %c0_20], %80 {strides = array<i32>} : memref<8x256xf32, #tpu.memory_space<vmem>>, vector<8x256xf32>,
    return
  }
  func.func @transform_0(%arg0: i32) -> (i32, i32) {
    %c0_i32 = arith.constant 0 : i32
    %c0_i32_0 = arith.constant 0 : i32
    return %c0_i32, %arg0 : i32, i32
  }
  func.func @transform_1(%arg0: i32) -> (i32, i32) {
    %c0_i32 = arith.constant 0 : i32
    %c0_i32_0 = arith.constant 0 : i32
    %c0_i32_1 = arith.constant 0 : i32
    return %c0_i32, %c0_i32_0 : i32, i32
  }
  func.func @transform_2(%arg0: i32) -> (i32, i32) {
    %c0_i32 = arith.constant 0 : i32
    %c0_i32_0 = arith.constant 0 : i32
    %c0_i32_1 = arith.constant 0 : i32
    return %c0_i32, %c0_i32_0 : i32, i32
  }
  func.func @transform_3(%arg0: i32) -> (i32, i32) {
    %c0_i32 = arith.constant 0 : i32
    %c0_i32_0 = arith.constant 0 : i32
    %c0_i32_1 = arith.constant 0 : i32
    return %c0_i32, %c0_i32_0 : i32, i32
  }
  func.func @transform_4(%arg0: i32) -> (i32, i32) {
    %c0_i32 = arith.constant 0 : i32
    %c0_i32_0 = arith.constant 0 : i32
    %c0_i32_1 = arith.constant 0 : i32
    return %c0_i32, %c0_i32_0 : i32, i32
  }
  func.func @transform_5(%arg0: i32) -> (i32, i32) {
    %c0_i32 = arith.constant 0 : i32
    %c0_i32_0 = arith.constant 0 : i32
    %c0_i32_1 = arith.constant 0 : i32
    return %c0_i32, %c0_i32_0 : i32, i32
  }
  func.func @transform_6(%arg0: i32) -> (i32, i32) {
    %c0_i32 = arith.constant 0 : i32
    %c0_i32_0 = arith.constant 0 : i32
    return %c0_i32, %arg0 : i32, i32
  }
}

</mosaic_0001>

<llo_original>
// kernel: residual_block_pallas.1
$region0: #{residual_block_pallas.1}
  #allocation0 [shape = 'u32[]', space=smem, size = 0x4, offset = 0x4, fixed_abs, tag = 'smem constant byte address 0x4 - core index']
  #allocation1 [shape = 'u32[144,128]{1,0:T(1,128)}', space=vmem, size = 0x12000, scoped, tag = 'internal scratch']
  %s0 = inlined_call_operand.vmem [shape: f32[8,512], index: 0, kind: input, shape index: {}]
  %s1 = inlined_call_operand.vmem [shape: bf16[8,72], index: 1, kind: input, shape index: {}]
  %s2 = inlined_call_operand.vmem [shape: f32[8,1], index: 2, kind: input, shape index: {}]
  %s3 = inlined_call_operand.vmem [shape: bf16[8,80], index: 3, kind: input, shape index: {}]
  %s4 = inlined_call_operand.vmem [shape: f32[8,1], index: 4, kind: input, shape index: {}]
  %s5 = inlined_call_operand.vmem [shape: f32[4,256], index: 5, kind: input, shape index: {}]
  %s6 = inlined_call_operand.vmem [shape: f32[8,512], index: 6, kind: output, shape index: {}]
  %s7 = sld [smem:[#allocation0]]
  $region57: #{residual_block_pallas.1} parent=0
    _
  %s9 = ssub.s32 1, %s7
  %s10 = scalar_select 0, %s9, %s7
  loop: start=0, step=1, limit=4
  $region2: #{residual_block_pallas.1} parent=0 // loop_pre_header
    _
  $region3: #{residual_block_pallas.1} parent=0 // loop_header
    %s12 = sphi 0, %s16
    %p13 = scmp.ge.s32.totalorder %s12, 4
    %s22 = sphi 0, %s24
    %s25 = sphi 0, %s22
    %s26 = sphi 0, %s25
    %s42 = sphi 0, %s26
    %s46 = sphi 0, %s46
    %s48 = sphi 0, %s46
    %s49 = sphi 0, %s48
    %s63 = sphi 0, %s49
    %s67 = sphi 0, %s67
    %s69 = sphi 0, %s67
    %s70 = sphi 0, %s69
    %s84 = sphi 0, %s70
    %s88 = sphi 0, %s88
    %s90 = sphi 0, %s88
    %s91 = sphi 0, %s90
    %s105 = sphi 0, %s91
    %s109 = sphi 0, %s109
    %s111 = sphi 0, %s109
    %s112 = sphi 0, %s111
    %s126 = sphi 0, %s112
    %s130 = sphi 0, %s130
    %s132 = sphi 0, %s130
    %s133 = sphi 0, %s132
    %s147 = sphi 0, %s133
    %s153 = sphi 0, %s155
    %s156 = sphi 0, %s153
    %s157 = sphi 0, %s156
    %s173 = sphi 0, %s157
  $region4: #{residual_block_pallas.1} parent=0 // loop_header_branch
    %15 = sbr.rel (%p13) target = $region8
  $region5: #{residual_block_pallas.1} parent=0 // loop_body
    %s17 = ssub.s32 %s12, 1
    %s18 = ssub.s32 %s12, 2
    %s19 = sadd.s32 %s12, 1
    %s20 = ssub.s32 %s12, %s19
    %p21 = scmp.eq.s32.totalorder %s20, 0
    %s23 = sadd.s32 %s22, 1
    %s24 = scalar_select %p21, %s22, %s23
    %p27 = pneg %p21
    %p28 = scmp.eq.s32.totalorder %s12, 1
    %p29 = por %p27, %p28
    %p30 = scmp.ne.s32.totalorder %s22, %s25
    %p31 = scmp.eq.s32.totalorder %s12, 0
    %p32 = por %p30, %p31
    %p33 = scmp.ne.s32.totalorder %s22, %s25
    %p34 = scmp.eq.s32.totalorder %s17, 1
    %p35 = por %p33, %p34
    %p36 = scmp.ne.s32.totalorder %s25, %s26
    %p37 = scmp.eq.s32.totalorder %s17, 0
    %p38 = por %p36, %p37
    %p39 = scmp.ne.s32.totalorder %s25, %s26
    %p40 = scmp.eq.s32.totalorder %s18, 1
    %p41 = por %p39, %p40
    %p43 = scmp.ne.s32.totalorder %s26, %s42
    %p44 = scmp.eq.s32.totalorder %s18, 0
    %p45 = por %p43, %p44
    %s47 = sadd.s32 %s46, 1
    %p50 = scmp.eq.s32.totalorder %s12, 1
    %p51 = scmp.ne.s32.totalorder %s46, %s48
    %p52 = scmp.eq.s32.totalorder %s12, 0
    %p53 = por %p51, %p52
    %p54 = scmp.ne.s32.totalorder %s46, %s48
    %p55 = scmp.eq.s32.totalorder %s17, 1
    %p56 = por %p54, %p55
    %p57 = scmp.ne.s32.totalorder %s48, %s49
    %p58 = scmp.eq.s32.totalorder %s17, 0
    %p59 = por %p57, %p58
    %p60 = scmp.ne.s32.totalorder %s48, %s49
    %p61 = scmp.eq.s32.totalorder %s18, 1
    %p62 = por %p60, %p61
    %p64 = scmp.ne.s32.totalorder %s49, %s63
    %p65 = scmp.eq.s32.totalorder %s18, 0
    %p66 = por %p64, %p65
    %s68 = sadd.s32 %s67, 1
    %p71 = scmp.eq.s32.totalorder %s12, 1
    %p72 = scmp.ne.s32.totalorder %s67, %s69
    %p73 = scmp.eq.s32.totalorder %s12, 0
    %p74 = por %p72, %p73
    %p75 = scmp.ne.s32.totalorder %s67, %s69
    %p76 = scmp.eq.s32.totalorder %s17, 1
    %p77 = por %p75, %p76
    %p78 = scmp.ne.s32.totalorder %s69, %s70
    %p79 = scmp.eq.s32.totalorder %s17, 0
    %p80 = por %p78, %p79
    %p81 = scmp.ne.s32.totalorder %s69, %s70
    %p82 = scmp.eq.s32.totalorder %s18, 1
    %p83 = por %p81, %p82
    %p85 = scmp.ne.s32.totalorder %s70, %s84
    %p86 = scmp.eq.s32.totalorder %s18, 0
    %p87 = por %p85, %p86
    %s89 = sadd.s32 %s88, 1
    %p92 = scmp.eq.s32.totalorder %s12, 1
    %p93 = scmp.ne.s32.totalorder %s88, %s90
    %p94 = scmp.eq.s32.totalorder %s12, 0
    %p95 = por %p93, %p94
    %p96 = scmp.ne.s32.totalorder %s88, %s90
    %p97 = scmp.eq.s32.totalorder %s17, 1
    %p98 = por %p96, %p97
    %p99 = scmp.ne.s32.totalorder %s90, %s91
    %p100 = scmp.eq.s32.totalorder %s17, 0
    %p101 = por %p99, %p100
    %p102 = scmp.ne.s32.totalorder %s90, %s91
    %p103 = scmp.eq.s32.totalorder %s18, 1
    %p104 = por %p102, %p103
    %p106 = scmp.ne.s32.totalorder %s91, %s105
    %p107 = scmp.eq.s32.totalorder %s18, 0
    %p108 = por %p106, %p107
    %s110 = sadd.s32 %s109, 1
    %p113 = scmp.eq.s32.totalorder %s12, 1
    %p114 = scmp.ne.s32.totalorder %s109, %s111
    %p115 = scmp.eq.s32.totalorder %s12, 0
    %p116 = por %p114, %p115
    %p117 = scmp.ne.s32.totalorder %s109, %s111
    %p118 = scmp.eq.s32.totalorder %s17, 1
    %p119 = por %p117, %p118
    %p120 = scmp.ne.s32.totalorder %s111, %s112
    %p121 = scmp.eq.s32.totalorder %s17, 0
    %p122 = por %p120, %p121
    %p123 = scmp.ne.s32.totalorder %s111, %s112
    %p124 = scmp.eq.s32.totalorder %s18, 1
    %p125 = por %p123, %p124
    %p127 = scmp.ne.s32.totalorder %s112, %s126
    %p128 = scmp.eq.s32.totalorder %s18, 0
    %p129 = por %p127, %p128
    %s131 = sadd.s32 %s130, 1
    %p134 = scmp.eq.s32.totalorder %s12, 1
    %p135 = scmp.ne.s32.totalorder %s130, %s132
    %p136 = scmp.eq.s32.totalorder %s12, 0
    %p137 = por %p135, %p136
    %p138 = scmp.ne.s32.totalorder %s130, %s132
    %p139 = scmp.eq.s32.totalorder %s17, 1
    %p140 = por %p138, %p139
    %p141 = scmp.ne.s32.totalorder %s132, %s133
    %p142 = scmp.eq.s32.totalorder %s17, 0
    %p143 = por %p141, %p142
    %p144 = scmp.ne.s32.totalorder %s132, %s133
    %p145 = scmp.eq.s32.totalorder %s18, 1
    %p146 = por %p144, %p145
    %p148 = scmp.ne.s32.totalorder %s133, %s147
    %p149 = scmp.eq.s32.totalorder %s18, 0
    %p150 = por %p148, %p149
    %s151 = ssub.s32 %s12, %s19
    %p152 = scmp.eq.s32.totalorder %s151, 0
    %s154 = sadd.s32 %s153, 1
    %s155 = scalar_select %p152, %s153, %s154
    %p158 = pneg %p152
    %p159 = scmp.eq.s32.totalorder %s12, 1
    %p160 = por %p158, %p159
    %p161 = scmp.ne.s32.totalorder %s153, %s156
    %p162 = scmp.eq.s32.totalorder %s12, 0
    %p163 = por %p161, %p162
    %p164 = scmp.ne.s32.totalorder %s153, %s156
    %p165 = scmp.eq.s32.totalorder %s17, 1
    %p166 = por %p164, %p165
    %p167 = scmp.ne.s32.totalorder %s156, %s157
    %p168 = scmp.eq.s32.totalorder %s17, 0
    %p169 = por %p167, %p168
    %p170 = scmp.ne.s32.totalorder %s156, %s157
    %p171 = scmp.eq.s32.totalorder %s18, 1
    %p172 = por %p170, %p171
    %p174 = scmp.ne.s32.totalorder %s157, %s173
    %p175 = scmp.eq.s32.totalorder %s18, 0
    %p176 = por %p174, %p175
    %p177 = scmp.le.s32.totalorder 1, %s12
    %p178 = scmp.lt.s32.totalorder %s12, 3
    %p179 = pnand %p177, %p178
    %p180 = pneg %p179
    // Predicated region
    $region9: #{residual_block_pallas.1} parent=5 // pred_check
      _
    $region10: #{residual_block_pallas.1} parent=5 // pred_check_branch
      %182 = sbr.rel (%p179) target = $region12
    $region11: #{residual_block_pallas.1} parent=5 // pred_region
      %s183 = ssub.s32 %s12, 1
      // Predicated region
      $region13: #{residual_block_pallas.1} parent=11 // pred_check
        %p184 = pneg %p59
      $region14: #{residual_block_pallas.1} parent=11 // pred_check_branch
        %186 = sbr.rel (%p184) target = $region16
      $region15: #{residual_block_pallas.1} parent=11 // pred_region
        _
      $region16: #{residual_block_pallas.1} parent=11 // pred_fallthru
        _
      // Predicated region
      $region17: #{residual_block_pallas.1} parent=11 // pred_check
        %p187 = pneg %p80
      $region18: #{residual_block_pallas.1} parent=11 // pred_check_branch
        %189 = sbr.rel (%p187) target = $region20
      $region19: #{residual_block_pallas.1} parent=11 // pred_region
        _
      $region20: #{residual_block_pallas.1} parent=11 // pred_fallthru
        _
      // Predicated region
      $region21: #{residual_block_pallas.1} parent=11 // pred_check
        %p190 = pneg %p101
      $region22: #{residual_block_pallas.1} parent=11 // pred_check_branch
        %192 = sbr.rel (%p190) target = $region24
      $region23: #{residual_block_pallas.1} parent=11 // pred_region
        _
      $region24: #{residual_block_pallas.1} parent=11 // pred_fallthru
        _
      // Predicated region
      $region25: #{residual_block_pallas.1} parent=11 // pred_check
        %p193 = pneg %p122
      $region26: #{residual_block_pallas.1} parent=11 // pred_check_branch
        %195 = sbr.rel (%p193) target = $region28
      $region27: #{residual_block_pallas.1} parent=11 // pred_region
        _
      $region28: #{residual_block_pallas.1} parent=11 // pred_fallthru
        _
      // Predicated region
      $region29: #{residual_block_pallas.1} parent=11 // pred_check
        %p196 = pneg %p143
      $region30: #{residual_block_pallas.1} parent=11 // pred_check_branch
        %198 = sbr.rel (%p196) target = $region32
      $region31: #{residual_block_pallas.1} parent=11 // pred_region
        _
      $region32: #{residual_block_pallas.1} parent=11 // pred_fallthru
        _
    $region12: #{residual_block_pallas.1} parent=5 // pred_fallthru
      _
    %p199 = scmp.lt.s32.totalorder %s12, 2
    // Predicated region
    $region33: #{residual_block_pallas.1} parent=5 // pred_check
      %p200 = pneg %p199
    $region34: #{residual_block_pallas.1} parent=5 // pred_check_branch
      %202 = sbr.rel (%p200) target = $region36
    $region35: #{residual_block_pallas.1} parent=5 // pred_region
      // Predicated region
      $region37: #{residual_block_pallas.1} parent=35 // pred_check
        %p203 = pneg %p32
      $region38: #{residual_block_pallas.1} parent=35 // pred_check_branch
        %205 = sbr.rel (%p203) target = $region40
      $region39: #{residual_block_pallas.1} parent=35 // pred_region
        %s206 = smul.u32 2, %s12
        %p207 = scmp.lt.s32.totalorder %s206, 3
        %s208 = scalar_select %p207, %s206, 3
        %s209 = smul.addr %s208, 8
        %s210 = scalar_lea.vmem %s0, %s209
        %s211 = smul.u32 2, %s12
      $region40: #{residual_block_pallas.1} parent=35 // pred_fallthru
        _
    $region36: #{residual_block_pallas.1} parent=5 // pred_fallthru
      _
    %p212 = scmp.le.s32.totalorder 1, %s12
    %p213 = scmp.lt.s32.totalorder %s12, 3
    %p214 = pnand %p212, %p213
    %p215 = pneg %p214
    // Predicated region
    $region41: #{residual_block_pallas.1} parent=5 // pred_check
      _
    $region42: #{residual_block_pallas.1} parent=5 // pred_check_branch
      %217 = sbr.rel (%p214) target = $region44
    $region43: #{residual_block_pallas.1} parent=5 // pred_region
      %s218 = ssub.s32 %s12, 1
      %s219 = smul.u32 2, %s17
      %p220 = scmp.lt.s32.totalorder %s219, 3
      %s221 = scalar_select %p220, %s219, 3
      %s222 = smul.addr %s221, 8
      %s223 = scalar_lea.vmem %s0, %s222
      %p224 = pneg %p38
      %p225 = pneg %p35
      %p226 = pneg %p59
      %p227 = pneg %p56
      %p228 = pneg %p80
      %p229 = pneg %p77
      %p230 = pneg %p101
      %p231 = pneg %p98
      %p232 = pneg %p122
      %p233 = pneg %p119
      %p234 = pneg %p143
      %p235 = pneg %p140
      %p236 = pneg %p169
      %p237 = pneg %p166
      %s238 = smul.u32 2, %s17
      %p239 = scmp.lt.s32.totalorder %s238, 3
      %s240 = scalar_select %p239, %s238, 3
      %s241 = smul.addr %s240, 8
      %s242 = scalar_lea.vmem %s6, %s241
      %s243 = smul.u32 2, %s17
      %p244 = scmp.lt.s32.totalorder %s243, 3
      %s245 = scalar_select %p244, %s243, 3
      %s246 = smul.addr %s245, 8
      %s247 = scalar_lea.vmem %s0, %s246
      %s248 = smul.u32 2, %s17
      %s249 = smul.u32 2, %s17
      %p250 = scmp.lt.s32.totalorder %s249, 3
      %s251 = scalar_select %p250, %s249, 3
      %s252 = smul.addr %s251, 8
      %s253 = scalar_lea.vmem %s6, %s252
      %s254 = smul.u32 2, %s17
      %v256 = vld [vmem:[%s247] sm:$0xff]
      %v257 = vld [vmem:[%s247 + $0x8] sm:$0xff]
      %v258 = vld [vmem:[%s5] ss:$4 sm:$0x3]
      %s259 = scalar_lea.vmem %s5, 1
      %v260 = vld [vmem:[%s259] ss:$4 sm:$0x3]
      %s261 = scalar_lea.vmem %s5, 2
      %v262 = vld [vmem:[%s261] ss:$4 sm:$0x3]
      %s263 = scalar_lea.vmem %s5, 3
      %v264 = vld [vmem:[%s263] ss:$4 sm:$0x3]
      %v265 = vmul.f32 %v258, %v262
      %v266 = vmul.f32 %v258, %v264
      %v267 = vmul.f32 %v260, %v262
      %v268 = vmul.f32 %v260, %v264
      %v270 = vlaneseq
      %v271 = vshrl.u32 %v270, 7
      %v272 = vsub.s32 0, %v271
      %v273 = vrot.slane %v265, %v272
      %v274 = vlaneseq
      %v275 = vshrl.u32 %v274, 7
      %v276 = vsub.s32 1, %v275
      %v277 = vrot.slane %v265, %v276
      %278 = vrot.lane.b32.xlu0 %v273, 111
      %v279 = vpop.permute.xlu0 %278
      %280 = vrot.lane.b32.xlu0 %v277, 111
      %v281 = vpop.permute.xlu0 %280
      %vm282 = vcmask 908288
      %v283 = vsel %vm282, %v279, %v281
      %v287 = vmul.f32 %v279, 0.0
      %v288 = vmul.f32 %v256, %v283
      %v289 = vmul.f32 %v257, %v281
      %v291 = vlaneseq
      %v292 = vshrl.u32 %v291, 7
      %v293 = vsub.s32 0, %v292
      %v294 = vrot.slane %v258, %v293
      %v295 = vlaneseq
      %v296 = vshrl.u32 %v295, 7
      %v297 = vsub.s32 1, %v296
      %v298 = vrot.slane %v258, %v297
      %299 = vrot.lane.b32.xlu0 %v294, 112
      %v300 = vpop.permute.xlu0 %299
      %301 = vrot.lane.b32.xlu0 %v298, 112
      %v302 = vpop.permute.xlu0 %301
      %vm303 = vcmask 916480
      %v304 = vsel %vm303, %v300, %v302
      %v308 = vmul.f32 %v300, 0.0
      %v309 = vmul.f32 %v256, %v304
      %v310 = vmul.f32 %v257, %v302
      %v312 = vlaneseq
      %v313 = vshrl.u32 %v312, 7
      %v314 = vsub.s32 0, %v313
      %v315 = vrot.slane %v266, %v314
      %v316 = vlaneseq
      %v317 = vshrl.u32 %v316, 7
      %v318 = vsub.s32 1, %v317
      %v319 = vrot.slane %v266, %v318
      %320 = vrot.lane.b32.xlu0 %v315, 113
      %v321 = vpop.permute.xlu0 %320
      %322 = vrot.lane.b32.xlu0 %v319, 113
      %v323 = vpop.permute.xlu0 %322
      %vm324 = vcmask 924672
      %v325 = vsel %vm324, %v321, %v323
      %v329 = vmul.f32 %v321, 0.0
      %v330 = vmul.f32 %v256, %v325
      %v331 = vmul.f32 %v257, %v323
      %v333 = vlaneseq
      %v334 = vshrl.u32 %v333, 7
      %v335 = vsub.s32 0, %v334
      %v336 = vrot.slane %v262, %v335
      %v337 = vlaneseq
      %v338 = vshrl.u32 %v337, 7
      %v339 = vsub.s32 1, %v338
      %v340 = vrot.slane %v262, %v339
      %341 = vrot.lane.b32.xlu0 %v336, 127
      %v342 = vpop.permute.xlu0 %341
      %343 = vrot.lane.b32.xlu0 %v340, 127
      %v344 = vpop.permute.xlu0 %343
      %vm345 = vcmask 1039360
      %v346 = vsel %vm345, %v342, %v344
      %v350 = vmul.f32 %v342, 0.0
      %v351 = vmul.f32 %v256, %v346
      %v352 = vmul.f32 %v257, %v344
      %v354 = vlaneseq
      %v355 = vshrl.u32 %v354, 7
      %v356 = vsub.s32 0, %v355
      %v357 = vrot.slane %v264, %v356
      %v358 = vlaneseq
      %v359 = vshrl.u32 %v358, 7
      %v360 = vsub.s32 1, %v359
      %v361 = vrot.slane %v264, %v360
      %362 = vrot.lane.b32.xlu0 %v357, 1
      %v363 = vpop.permute.xlu0 %362
      %364 = vrot.lane.b32.xlu0 %v361, 1
      %v365 = vpop.permute.xlu0 %364
      %vm366 = vcmask 7168
      %v367 = vsel %vm366, %v363, %v365
      %v371 = vmul.f32 %v256, %v363
      %v372 = vmul.f32 %v257, %v367
      %v373 = vmul.f32 %v365, 0.0
      %v375 = vlaneseq
      %v376 = vshrl.u32 %v375, 7
      %v377 = vsub.s32 0, %v376
      %v378 = vrot.slane %v267, %v377
      %v379 = vlaneseq
      %v380 = vshrl.u32 %v379, 7
      %v381 = vsub.s32 1, %v380
      %v382 = vrot.slane %v267, %v381
      %383 = vrot.lane.b32.xlu0 %v378, 15
      %v384 = vpop.permute.xlu0 %383
      %385 = vrot.lane.b32.xlu0 %v382, 15
      %v386 = vpop.permute.xlu0 %385
      %vm387 = vcmask 121856
      %v388 = vsel %vm387, %v384, %v386
      %v392 = vmul.f32 %v256, %v384
      %v393 = vmul.f32 %v257, %v388
      %v394 = vmul.f32 %v386, 0.0
      %v396 = vlaneseq
      %v397 = vshrl.u32 %v396, 7
      %v398 = vsub.s32 0, %v397
      %v399 = vrot.slane %v260, %v398
      %v400 = vlaneseq
      %v401 = vshrl.u32 %v400, 7
      %v402 = vsub.s32 1, %v401
      %v403 = vrot.slane %v260, %v402
      %404 = vrot.lane.b32.xlu0 %v399, 16
      %v405 = vpop.permute.xlu0 %404
      %406 = vrot.lane.b32.xlu0 %v403, 16
      %v407 = vpop.permute.xlu0 %406
      %vm408 = vcmask 130048
      %v409 = vsel %vm408, %v405, %v407
      %v413 = vmul.f32 %v256, %v405
      %v414 = vmul.f32 %v257, %v409
      %v415 = vmul.f32 %v407, 0.0
      %v417 = vlaneseq
      %v418 = vshrl.u32 %v417, 7
      %v419 = vsub.s32 0, %v418
      %v420 = vrot.slane %v268, %v419
      %v421 = vlaneseq
      %v422 = vshrl.u32 %v421, 7
      %v423 = vsub.s32 1, %v422
      %v424 = vrot.slane %v268, %v423
      %425 = vrot.lane.b32.xlu0 %v420, 17
      %v426 = vpop.permute.xlu0 %425
      %427 = vrot.lane.b32.xlu0 %v424, 17
      %v428 = vpop.permute.xlu0 %427
      %vm429 = vcmask 138240
      %v430 = vsel %vm429, %v426, %v428
      %v434 = vmul.f32 %v256, %v426
      %v435 = vmul.f32 %v257, %v430
      %v436 = vmul.f32 %v428, 0.0
      %440 = vrot.lane.b32.xlu0 %v308, 127
      %v441 = vpop.permute.xlu0 %440
      %442 = vrot.lane.b32.xlu0 %v309, 127
      %v443 = vpop.permute.xlu0 %442
      %444 = vrot.lane.b32.xlu0 %v310, 127
      %v445 = vpop.permute.xlu0 %444
      %v446 = vsel %vm345, %v441, %v443
      %v447 = vsel %vm345, %v443, %v445
      %454 = vrot.lane.b32.xlu0 %v329, 126
      %v455 = vpop.permute.xlu0 %454
      %456 = vrot.lane.b32.xlu0 %v330, 126
      %v457 = vpop.permute.xlu0 %456
      %458 = vrot.lane.b32.xlu0 %v331, 126
      %v459 = vpop.permute.xlu0 %458
      %vm460 = vcmask 1031168
      %v461 = vsel %vm460, %v455, %v457
      %v462 = vsel %vm460, %v457, %v459
      %469 = vrot.lane.b32.xlu0 %v350, 112
      %v470 = vpop.permute.xlu0 %469
      %471 = vrot.lane.b32.xlu0 %v351, 112
      %v472 = vpop.permute.xlu0 %471
      %473 = vrot.lane.b32.xlu0 %v352, 112
      %v474 = vpop.permute.xlu0 %473
      %v475 = vsel %vm303, %v470, %v472
      %v476 = vsel %vm303, %v472, %v474
      %482 = vrot.lane.b32.xlu0 %v256, 111
      %v483 = vpop.permute.xlu0 %482
      %484 = vrot.lane.b32.xlu0 %v257, 111
      %v485 = vpop.permute.xlu0 %484
      %v486 = vsel %vm282, %v483, %v485
      %493 = vrot.lane.b32.xlu0 %v371, 110
      %v494 = vpop.permute.xlu0 %493
      %495 = vrot.lane.b32.xlu0 %v372, 110
      %v496 = vpop.permute.xlu0 %495
      %497 = vrot.lane.b32.xlu0 %v373, 110
      %v498 = vpop.permute.xlu0 %497
      %vm499 = vcmask 900096
      %v500 = vsel %vm499, %v494, %v496
      %v501 = vsel %vm499, %v496, %v498
      %508 = vrot.lane.b32.xlu0 %v392, 96
      %v509 = vpop.permute.xlu0 %508
      %510 = vrot.lane.b32.xlu0 %v393, 96
      %v511 = vpop.permute.xlu0 %510
      %512 = vrot.lane.b32.xlu0 %v394, 96
      %v513 = vpop.permute.xlu0 %512
      %vm514 = vcmask 785408
      %v515 = vsel %vm514, %v509, %v511
      %v516 = vsel %vm514, %v511, %v513
      %523 = vrot.lane.b32.xlu0 %v413, 95
      %v524 = vpop.permute.xlu0 %523
      %525 = vrot.lane.b32.xlu0 %v414, 95
      %v526 = vpop.permute.xlu0 %525
      %527 = vrot.lane.b32.xlu0 %v415, 95
      %v528 = vpop.permute.xlu0 %527
      %vm529 = vcmask 777216
      %v530 = vsel %vm529, %v524, %v526
      %v531 = vsel %vm529, %v526, %v528
      %538 = vrot.lane.b32.xlu0 %v434, 94
      %v539 = vpop.permute.xlu0 %538
      %540 = vrot.lane.b32.xlu0 %v435, 94
      %v541 = vpop.permute.xlu0 %540
      %542 = vrot.lane.b32.xlu0 %v436, 94
      %v543 = vpop.permute.xlu0 %542
      %vm544 = vcmask 769024
      %v545 = vsel %vm544, %v539, %v541
      %v546 = vsel %vm544, %v541, %v543
      %v550 = vpack.c.bf16 %v446, %v287
      %v551 = vpack.c.bf16 %v447, %v288
      %v552 = vpack.c.bf16 %v445, %v289
      %v553 = vpack.c.bf16 %v475, %v461
      %v554 = vpack.c.bf16 %v476, %v462
      %v555 = vpack.c.bf16 %v474, %v459
      %v556 = vpack.c.bf16 %v494, %v483
      %v557 = vpack.c.bf16 %v500, %v486
      %v558 = vpack.c.bf16 %v501, %v485
      %v559 = vpack.c.bf16 %v524, %v509
      %v560 = vpack.c.bf16 %v530, %v515
      %v561 = vpack.c.bf16 %v531, %v516
      %v562 = vpack.c.bf16 %v539, %v539
      %v563 = vpack.c.bf16 %v545, %v545
      %v564 = vpack.c.bf16 %v546, %v546
      %v565 = vld [vmem:[%s1] sm:$0xf]
      %v566 = vld [vmem:[%s2] sm:$0xff]
      %568 = vset.pattern.permute.xlu0 0
      %569 = vperm.xlu0 %568, %v566
      %v570 = vpop.permute.xlu0 %569
      %587 = vrot.lane.b32.xlu0 %v550, 17
      %v588 = vpop.permute.xlu0 %587
      %589 = vrot.lane.b32.xlu0 %v551, 17
      %v590 = vpop.permute.xlu0 %589
      %591 = vrot.lane.b32.xlu0 %v552, 17
      %v592 = vpop.permute.xlu0 %591
      %593 = vrot.lane.b32.xlu0 %v553, 17
      %v594 = vpop.permute.xlu0 %593
      %595 = vrot.lane.b32.xlu0 %v554, 17
      %v596 = vpop.permute.xlu0 %595
      %597 = vrot.lane.b32.xlu0 %v555, 17
      %v598 = vpop.permute.xlu0 %597
      %599 = vrot.lane.b32.xlu0 %v556, 17
      %v600 = vpop.permute.xlu0 %599
      %601 = vrot.lane.b32.xlu0 %v557, 17
      %v602 = vpop.permute.xlu0 %601
      %603 = vrot.lane.b32.xlu0 %v558, 17
      %v604 = vpop.permute.xlu0 %603
      %605 = vrot.lane.b32.xlu0 %v559, 17
      %v606 = vpop.permute.xlu0 %605
      %607 = vrot.lane.b32.xlu0 %v560, 17
      %v608 = vpop.permute.xlu0 %607
      %609 = vrot.lane.b32.xlu0 %v561, 17
      %v610 = vpop.permute.xlu0 %609
      %611 = vrot.lane.b32.xlu0 %v562, 17
      %v612 = vpop.permute.xlu0 %611
      %613 = vrot.lane.b32.xlu0 %v563, 17
      %v614 = vpop.permute.xlu0 %613
      %615 = vrot.lane.b32.xlu0 %v564, 17
      %v616 = vpop.permute.xlu0 %615
      %vm617 = vcmask 138240
      %v618 = vsel %vm617, %v588, %v590
      %v619 = vsel %vm617, %v590, %v592
      %v620 = vsel %vm617, %v594, %v596
      %v621 = vsel %vm617, %v596, %v598
      %v622 = vsel %vm617, %v600, %v602
      %v623 = vsel %vm617, %v602, %v604
      %v624 = vsel %vm617, %v606, %v608
      %v625 = vsel %vm617, %v608, %v610
      %v626 = vsel %vm617, %v612, %v614
      %v627 = vsel %vm617, %v614, %v616
      %vm636 = vcmask 588800
      %v638 = vsel %vm636, %v565, 0
      %vm640 = vcmask 1043456
      %v642 = vsel %vm640, %v626, 0
      %v645 = vsel %vm640, %v627, 0
      %647 = vmatprep.subr.bf16.mxu0 %v619
      %648 = vmatpush1.bf16.msra.mxu0 %v618
      %649 = vmatprep.subr.bf16.mxu0 %v621
      %650 = vmatpush1.bf16.msra.mxu0 %v620
      %651 = vmatprep.subr.bf16.mxu0 %v623
      %652 = vmatpush1.bf16.msra.mxu0 %v622
      %653 = vmatprep.subr.bf16.mxu0 %v625
      %654 = vmatpush1.bf16.msra.mxu0 %v624
      %655 = vmatprep.subr.bf16.mxu0 %v645
      %656 = vmatpush1.bf16.msra.mxu0 %v642
      %657 = vmatprep.subr.bf16.mxu0 0
      %658 = vmatpush1.bf16.msra.mxu0 0
      %659 = vmatprep.subr.bf16.mxu0 0
      %660 = vmatpush1.bf16.msra.mxu0 0
      %661 = vmatprep.subr.bf16.mxu0 0
      %662 = vmatpush1.bf16.msra.mxu0 0
      %663 = vmatprep.subr.bf16.mxu0 0
      %664 = vmatpush1.bf16.msra.mxu0 0
      %665 = vmatprep.subr.bf16.mxu0 0
      %666 = vmatpush1.bf16.msra.mxu0 0
      %667 = vmatprep.subr.bf16.mxu0 0
      %668 = vmatpush1.bf16.msra.mxu0 0
      %669 = vmatprep.subr.bf16.mxu0 0
      %670 = vmatpush1.bf16.msra.mxu0 0
      %671 = vmatprep.subr.bf16.mxu0 0
      %672 = vmatpush1.bf16.msra.mxu0 0
      %673 = vmatprep.subr.bf16.mxu0 0
      %674 = vmatpush1.bf16.msra.mxu0 0
      %675 = vmatprep.subr.bf16.mxu0 0
      %676 = vmatpush1.bf16.msra.mxu0 0
      %677 = vmatprep.subr.bf16.mxu0 0
      %678 = vmatpush1.bf16.msra.mxu0 0
      %679 = vmatprep.mubr.bf16.mxu0 0
      %680 = vmatmul.mubr.bf16.gmra.mrb[0].mxu0 %v638
      %v681 = vpop.f32.mrb[0].mxu0
      %v682 = vadd.f32 %v570, %v681
      %v683 = vpop.f32.mrb[0].mxu0
      %v684 = vadd.f32 %v570, %v683
      %v685 = vpop.f32.mrb[0].mxu0
      %v686 = vpop.f32.mrb[0].mxu0
      %687 = vdwg.mxu0
      %v688 = vmax.f32 %v682, 0.0
      %v689 = vmax.f32 %v684, 0.0
      %v690 = vmul.f32 %v688, %v283
      %v691 = vmul.f32 %v689, %v281
      %v692 = vmul.f32 %v688, %v304
      %v693 = vmul.f32 %v689, %v302
      %v694 = vmul.f32 %v688, %v325
      %v695 = vmul.f32 %v689, %v323
      %v696 = vmul.f32 %v688, %v346
      %v697 = vmul.f32 %v689, %v344
      %v698 = vmul.f32 %v688, %v363
      %v699 = vmul.f32 %v689, %v367
      %v700 = vmul.f32 %v688, %v384
      %v701 = vmul.f32 %v689, %v388
      %v702 = vmul.f32 %v688, %v405
      %v703 = vmul.f32 %v689, %v409
      %v704 = vmul.f32 %v688, %v426
      %v705 = vmul.f32 %v689, %v430
      %708 = vrot.lane.b32.xlu0 %v692, 127
      %v709 = vpop.permute.xlu0 %708
      %710 = vrot.lane.b32.xlu0 %v693, 127
      %v711 = vpop.permute.xlu0 %710
      %v712 = vsel %vm345, %v441, %v709
      %v713 = vsel %vm345, %v709, %v711
      %719 = vrot.lane.b32.xlu0 %v694, 126
      %v720 = vpop.permute.xlu0 %719
      %721 = vrot.lane.b32.xlu0 %v695, 126
      %v722 = vpop.permute.xlu0 %721
      %v723 = vsel %vm460, %v455, %v720
      %v724 = vsel %vm460, %v720, %v722
      %730 = vrot.lane.b32.xlu0 %v696, 112
      %v731 = vpop.permute.xlu0 %730
      %732 = vrot.lane.b32.xlu0 %v697, 112
      %v733 = vpop.permute.xlu0 %732
      %v734 = vsel %vm303, %v470, %v731
      %v735 = vsel %vm303, %v731, %v733
      %741 = vrot.lane.b32.xlu0 %v688, 111
      %v742 = vpop.permute.xlu0 %741
      %743 = vrot.lane.b32.xlu0 %v689, 111
      %v744 = vpop.permute.xlu0 %743
      %v745 = vsel %vm282, %v742, %v744
      %751 = vrot.lane.b32.xlu0 %v698, 110
      %v752 = vpop.permute.xlu0 %751
      %753 = vrot.lane.b32.xlu0 %v699, 110
      %v754 = vpop.permute.xlu0 %753
      %v755 = vsel %vm499, %v752, %v754
      %v756 = vsel %vm499, %v754, %v498
      %762 = vrot.lane.b32.xlu0 %v700, 96
      %v763 = vpop.permute.xlu0 %762
      %764 = vrot.lane.b32.xlu0 %v701, 96
      %v765 = vpop.permute.xlu0 %764
      %v766 = vsel %vm514, %v763, %v765
      %v767 = vsel %vm514, %v765, %v513
      %773 = vrot.lane.b32.xlu0 %v702, 95
      %v774 = vpop.permute.xlu0 %773
      %775 = vrot.lane.b32.xlu0 %v703, 95
      %v776 = vpop.permute.xlu0 %775
      %v777 = vsel %vm529, %v774, %v776
      %v778 = vsel %vm529, %v776, %v528
      %784 = vrot.lane.b32.xlu0 %v704, 94
      %v785 = vpop.permute.xlu0 %784
      %786 = vrot.lane.b32.xlu0 %v705, 94
      %v787 = vpop.permute.xlu0 %786
      %v788 = vsel %vm544, %v785, %v787
      %v789 = vsel %vm544, %v787, %v543
      %v793 = vpack.c.bf16 %v712, %v287
      %v794 = vpack.c.bf16 %v713, %v690
      %v795 = vpack.c.bf16 %v711, %v691
      %v796 = vpack.c.bf16 %v734, %v723
      %v797 = vpack.c.bf16 %v735, %v724
      %v798 = vpack.c.bf16 %v733, %v722
      %v799 = vpack.c.bf16 %v752, %v742
      %v800 = vpack.c.bf16 %v755, %v745
      %v801 = vpack.c.bf16 %v756, %v744
      %v802 = vpack.c.bf16 %v774, %v763
      %v803 = vpack.c.bf16 %v777, %v766
      %v804 = vpack.c.bf16 %v778, %v767
      %v805 = vpack.c.bf16 %v483, %v785
      %v806 = vpack.c.bf16 %v486, %v788
      %v807 = vpack.c.bf16 %v485, %v789
      %v808 = vld [vmem:[%s3] sm:$0xf]
      %v809 = vld [vmem:[%s4] sm:$0xff]
      %811 = vset.pattern.permute.xlu0 0
      %812 = vperm.xlu0 %811, %v809
      %v813 = vpop.permute.xlu0 %812
      %830 = vrot.lane.b32.xlu0 %v793, 17
      %v831 = vpop.permute.xlu0 %830
      %832 = vrot.lane.b32.xlu0 %v794, 17
      %v833 = vpop.permute.xlu0 %832
      %834 = vrot.lane.b32.xlu0 %v795, 17
      %v835 = vpop.permute.xlu0 %834
      %836 = vrot.lane.b32.xlu0 %v796, 17
      %v837 = vpop.permute.xlu0 %836
      %838 = vrot.lane.b32.xlu0 %v797, 17
      %v839 = vpop.permute.xlu0 %838
      %840 = vrot.lane.b32.xlu0 %v798, 17
      %v841 = vpop.permute.xlu0 %840
      %842 = vrot.lane.b32.xlu0 %v799, 17
      %v843 = vpop.permute.xlu0 %842
      %844 = vrot.lane.b32.xlu0 %v800, 17
      %v845 = vpop.permute.xlu0 %844
      %846 = vrot.lane.b32.xlu0 %v801, 17
      %v847 = vpop.permute.xlu0 %846
      %848 = vrot.lane.b32.xlu0 %v802, 17
      %v849 = vpop.permute.xlu0 %848
      %850 = vrot.lane.b32.xlu0 %v803, 17
      %v851 = vpop.permute.xlu0 %850
      %852 = vrot.lane.b32.xlu0 %v804, 17
      %v853 = vpop.permute.xlu0 %852
      %854 = vrot.lane.b32.xlu0 %v805, 17
      %v855 = vpop.permute.xlu0 %854
      %856 = vrot.lane.b32.xlu0 %v806, 17
      %v857 = vpop.permute.xlu0 %856
      %858 = vrot.lane.b32.xlu0 %v807, 17
      %v859 = vpop.permute.xlu0 %858
      %v860 = vsel %vm617, %v831, %v833
      %v861 = vsel %vm617, %v833, %v835
      %v862 = vsel %vm617, %v837, %v839
      %v863 = vsel %vm617, %v839, %v841
      %v864 = vsel %vm617, %v843, %v845
      %v865 = vsel %vm617, %v845, %v847
      %v866 = vsel %vm617, %v849, %v851
      %v867 = vsel %vm617, %v851, %v853
      %v868 = vsel %vm617, %v855, %v857
      %v869 = vsel %vm617, %v857, %v859
      %vm880 = vcmask 654336
      %v882 = vsel %vm880, %v808, 0
      %884 = vmatprep.subr.bf16.mxu0 %v861
      %885 = vmatpush1.bf16.msra.mxu0 %v860
      %886 = vmatprep.subr.bf16.mxu0 %v863
      %887 = vmatpush1.bf16.msra.mxu0 %v862
      %888 = vmatprep.subr.bf16.mxu0 %v865
      %889 = vmatpush1.bf16.msra.mxu0 %v864
      %890 = vmatprep.subr.bf16.mxu0 %v867
      %891 = vmatpush1.bf16.msra.mxu0 %v866
      %892 = vmatprep.subr.bf16.mxu0 %v869
      %893 = vmatpush1.bf16.msra.mxu0 %v868
      %894 = vmatprep.subr.bf16.mxu0 0
      %895 = vmatpush1.bf16.msra.mxu0 0
      %896 = vmatprep.subr.bf16.mxu0 0
      %897 = vmatpush1.bf16.msra.mxu0 0
      %898 = vmatprep.subr.bf16.mxu0 0
      %899 = vmatpush1.bf16.msra.mxu0 0
      %900 = vmatprep.subr.bf16.mxu0 0
      %901 = vmatpush1.bf16.msra.mxu0 0
      %902 = vmatprep.subr.bf16.mxu0 0
      %903 = vmatpush1.bf16.msra.mxu0 0
      %904 = vmatprep.subr.bf16.mxu0 0
      %905 = vmatpush1.bf16.msra.mxu0 0
      %906 = vmatprep.subr.bf16.mxu0 0
      %907 = vmatpush1.bf16.msra.mxu0 0
      %908 = vmatprep.subr.bf16.mxu0 0
      %909 = vmatpush1.bf16.msra.mxu0 0
      %910 = vmatprep.subr.bf16.mxu0 0
      %911 = vmatpush1.bf16.msra.mxu0 0
      %912 = vmatprep.subr.bf16.mxu0 0
      %913 = vmatpush1.bf16.msra.mxu0 0
      %914 = vmatprep.subr.bf16.mxu0 0
      %915 = vmatpush1.bf16.msra.mxu0 0
      %916 = vmatprep.mubr.bf16.mxu0 0
      %917 = vmatmul.mubr.bf16.gmra.mrb[0].mxu0 %v882
      %v918 = vpop.f32.mrb[0].mxu0
      %v919 = vadd.f32 %v813, %v918
      %v920 = vpop.f32.mrb[0].mxu0
      %v921 = vadd.f32 %v813, %v920
      %v922 = vpop.f32.mrb[0].mxu0
      %v923 = vpop.f32.mrb[0].mxu0
      %924 = vdwg.mxu0
      %v925 = vmax.f32 %v919, 0.0
      %v926 = vmax.f32 %v921, 0.0
      %927 = vst [vmem:[%s253] sm:$0xff] %v925
      %928 = vst [vmem:[%s253 + $0x8] sm:$0xff] %v926
      %s929 = smul.u32 2, %s17
      %p930 = scmp.lt.s32.totalorder %s929, 3
      %s931 = scalar_select %p930, %s929, 3
      %s932 = smul.addr %s931, 8
      %s933 = scalar_lea.vmem %s6, %s932
      // Predicated region
      $region45: #{residual_block_pallas.1} parent=43 // pred_check
        %p934 = pneg %p166
      $region46: #{residual_block_pallas.1} parent=43 // pred_check_branch
        %936 = sbr.rel (%p934) target = $region48
      $region47: #{residual_block_pallas.1} parent=43 // pred_region
        %s937 = smul.u32 2, %s17
      $region48: #{residual_block_pallas.1} parent=43 // pred_fallthru
        _
    $region44: #{residual_block_pallas.1} parent=5 // pred_fallthru
      _
    %p938 = scmp.le.s32.totalorder 2, %s12
    // Predicated region
    $region49: #{residual_block_pallas.1} parent=5 // pred_check
      %p939 = pneg %p938
    $region50: #{residual_block_pallas.1} parent=5 // pred_check_branch
      %941 = sbr.rel (%p939) target = $region52
    $region51: #{residual_block_pallas.1} parent=5 // pred_region
      %s942 = ssub.s32 %s12, 2
      // Predicated region
      $region53: #{residual_block_pallas.1} parent=51 // pred_check
        %p943 = pneg %p172
      $region54: #{residual_block_pallas.1} parent=51 // pred_check_branch
        %945 = sbr.rel (%p943) target = $region56
      $region55: #{residual_block_pallas.1} parent=51 // pred_region
        %s946 = smul.u32 2, %s18
        %p947 = scmp.lt.s32.totalorder %s946, 3
        %s948 = scalar_select %p947, %s946, 3
        %s949 = smul.addr %s948, 8
        %s950 = scalar_lea.vmem %s6, %s949
      $region56: #{residual_block_pallas.1} parent=51 // pred_fallthru
        _
    $region52: #{residual_block_pallas.1} parent=5 // pred_fallthru
      _
  $region6: #{residual_block_pallas.1} parent=0 // loop_footer
    %s16 = sadd.s32 1, %s12
  $region7: #{residual_block_pallas.1} parent=0 // loop_footer_branch
    %11 = sbr.rel target = $region3
  $region8: #{residual_block_pallas.1} parent=0 // loop_exit
    _

</llo_original>
